<compile_context>
chip_gen: v7x
topology: tpu7x:2x2x1
jax: 0.10.0
libtpu: 0.0.40
codegen_flags: <defaults>
</compile_context>

<pallas_src>
import functools
import math

import jax
import jax.numpy as jnp
from jax.experimental import pallas as pl
from jax.experimental.pallas import tpu as pltpu


def _round_up(x, m):
    return ((x + m - 1) // m) * m


def _beta_intersection_kernel(x_ref, w1_ref, b1_ref, w2_ref, b2_ref, out_ref,
                              *, W, E):
    P, R, F = x_ref.shape              # P lane-groups, R = (tb/P)*W rows, F = 2E+1
    twoE = 2 * E
    TB = (P * R) // W                  # batch rows handled this grid step
    TBg = TB // P                      # batch rows per lane-group
    mm_dtype = w1_ref.dtype

    # Leading-dim merge: each group's row count is sublane-tile aligned, so
    # this reshape is layout-preserving (no relayout copy).
    x = x_ref[...].reshape(P * R, F)
    x_f = x.astype(jnp.float32)
    feats = x[:, :twoE].astype(mm_dtype)          # [alpha | beta] matmul operand
    bias = x_f[:, twoE:twoE + 1]                  # (rows, 1) additive mask bias

    # layer1: one fused K=2E MXU matmul, f32 accumulation, then ReLU.
    h = jnp.dot(feats, w1_ref[...], preferred_element_type=jnp.float32)
    h = jnp.maximum(h + b1_ref[...], 0.0)

    # layer2 -> attention logits; add layer bias and the mask bias
    # (minor-1 broadcast over the E lanes).
    att = jnp.dot(h.astype(mm_dtype), w2_ref[...],
                  preferred_element_type=jnp.float32)
    att = att + b2_ref[...] + bias                # (rows, E)

    # softmax over the window axis (dim=-2 in the PyTorch module), in f32.
    att = att.reshape(TB, W, E)
    m = jnp.max(att, axis=1, keepdims=True)
    e = jnp.exp(att - m)
    attn = e / jnp.sum(e, axis=1, keepdims=True)  # (TB, W, E)

    # attention-weighted sums of [alpha | beta] at full 2E lane width.
    attn2 = jnp.concatenate([attn, attn], axis=-1)            # (TB, W, 2E)
    x3 = x_f[:, :twoE].reshape(TB, W, twoE)
    sums = jnp.sum(x3 * attn2, axis=1)                        # (TB, 2E)

    # Lane-dense store: the P batch-groups sit side by side in lanes, so the
    # block minor dim is P*2E (128 for E=32) and the store is a full vst.
    if P == 1:
        out_ref[...] = sums
    else:
        out_ref[...] = jnp.concatenate(
            [sums[p * TBg:(p + 1) * TBg] for p in range(P)], axis=-1)


def beta_intersection(alpha, beta, mask, params, *, tb=1024,
                      matmul_dtype=jnp.bfloat16, input_dtype=None,
                      input_buffers=None):
    """BetaIntersection.forward.  alpha/beta: (..., W, E); mask: (..., W) bool.

    Returns (alpha_out, beta_out), each (..., E) float32.
    matmul_dtype=jnp.float32 selects the exact path (inputs stream f32 too).
    input_buffers=3 is recommended on HBM-bound v5e.
    """
    W1, b1, W2, b2 = params            # torch nn.Linear convention: (out, in)
    *lead, W, E = alpha.shape
    twoE = 2 * E
    F = twoE + 1                       # +1 feature column carrying the mask bias
    B = int(math.prod(lead)) if lead else 1

    if input_dtype is None:
        input_dtype = matmul_dtype     # bf16 default / f32 on the exact path

    # Lane-packing factor: with 2E < 128, `pack` batch rows share one 128-lane
    # output row (and the input batch is split into `pack` lane-groups).
    pack = 128 // twoE if (twoE < 128 and 128 % twoE == 0) else 1
    align = 8 * pack

    # Tile selection: >= 4 grid steps when B allows it (>= 2 per v7x TensorCore
    # so the pipeline reaches steady state), pad B by at most one tile.
    n_tiles = max(pl.cdiv(B, tb), 4)
    tb_eff = max(align, _round_up(pl.cdiv(B, n_tiles), align))
    tb_eff = min(tb_eff, _round_up(tb, align))
    B_pad = _round_up(B, tb_eff)
    grid = (B_pad // tb_eff,)
    G = B_pad // pack                  # batch rows per lane-group

    # --- wrapper-side packing (should fuse into the alpha/beta producers) ---
    xa = alpha.reshape(B, W, E).astype(jnp.float32)
    xb = beta.reshape(B, W, E).astype(jnp.float32)
    bias = jnp.where(mask.reshape(B, W, 1), 0.0, -10000.0).astype(jnp.float32)
    x = jnp.concatenate([xa, xb, bias], axis=-1)             # (B, W, 2E+1)
    if B_pad != B:
        x = jnp.pad(x, ((0, B_pad - B), (0, 0), (0, 0)))
    x = x.reshape(pack, G * W, F).astype(input_dtype)

    # Pre-arranged weights: transposed for the MXU, matmul dtype; the layer
    # biases stay f32 (added after f32 accumulation).
    w1t = W1.T.astype(matmul_dtype)                          # (2E, 2E)
    w2t = W2.T.astype(matmul_dtype)                          # (2E, E)
    b1r = b1.reshape(1, twoE).astype(jnp.float32)
    b2r = b2.reshape(1, E).astype(jnp.float32)

    in_bytes = jnp.dtype(input_dtype).itemsize
    mm_bytes = jnp.dtype(matmul_dtype).itemsize
    rows = tb_eff * W
    N = B_pad * W

    # VMEM: double-buffered I/O plus a generous bound on the f32 temporaries
    # (E-wide softmax intermediates counted as lane-padded to 128).
    io_vmem = (2 * rows * 128 * in_bytes
               + 2 * (tb_eff // pack) * max(pack * twoE, 128) * 4
               + 4 * (twoE * twoE + twoE * E + 3 * twoE) * mm_bytes)
    inter_vmem = 4 * rows * max(twoE, 128) * 4 + 3 * rows * 128 * 4
    vmem_limit = int(min(64 << 20,
                         max(32 << 20, io_vmem + inter_vmem + (4 << 20))))

    cost = pl.CostEstimate(
        flops=12 * N * E * E + 14 * N * E,        # two GEMMs + elementwise
        transcendentals=N * E,                    # softmax exp
        bytes_accessed=(N * F * in_bytes + B_pad * twoE * 4
                        + (twoE * twoE + twoE * E) * mm_bytes + 3 * twoE * 4),
    )

    x_spec_kw = {}
    if input_buffers is not None:                 # e.g. 3 on HBM-bound v5e
        x_spec_kw["pipeline_mode"] = pl.Buffered(input_buffers)

    kernel = functools.partial(_beta_intersection_kernel, W=W, E=E)
    out = pl.pallas_call(
        kernel,
        out_shape=jax.ShapeDtypeStruct((G, pack * twoE), jnp.float32),
        grid_spec=pltpu.PrefetchScalarGridSpec(
            num_scalar_prefetch=0,
            grid=grid,
            in_specs=[
                pl.BlockSpec((pack, (tb_eff // pack) * W, F),
                             lambda i: (0, i, 0), **x_spec_kw),   # packed x
                pl.BlockSpec((twoE, twoE), lambda i: (0, 0)),     # W1^T
                pl.BlockSpec((1, twoE), lambda i: (0, 0)),        # b1
                pl.BlockSpec((twoE, E), lambda i: (0, 0)),        # W2^T
                pl.BlockSpec((1, E), lambda i: (0, 0)),           # b2
            ],
            out_specs=pl.BlockSpec((tb_eff // pack, pack * twoE),
                                   lambda i: (i, 0)),
        ),
        compiler_params=pltpu.CompilerParams(
            dimension_semantics=("parallel",),
            vmem_limit_bytes=vmem_limit,
        ),
        cost_estimate=cost,
    )(x, w1t, b1r, w2t, b2r)

    # Un-pack the lane-dense output (free reshapes / transpose in XLA).
    sums = out.reshape(G, pack, twoE).transpose(1, 0, 2).reshape(B_pad, twoE)
    out_alpha = sums[:B, :E].reshape(*lead, E)
    out_beta = sums[:B, E:].reshape(*lead, E)
    return out_alpha, out_beta


def beta_intersection_ref(alpha, beta, mask, params):
    """Pure-JAX reference mirroring the PyTorch module exactly (f32)."""
    W1, b1, W2, b2 = params
    x = jnp.concatenate([alpha, beta], axis=-1)
    m = jnp.where(mask, 0.0, -10000.0)
    h = jax.nn.relu(x @ W1.T + b1)
    att_in = h @ W2.T + b2
    att_in = att_in + m[..., None]
    attn = jax.nn.softmax(att_in, axis=-2)
    return (jnp.sum(alpha * attn, axis=-2), jnp.sum(beta * attn, axis=-2))


def init_params(key, emb_dim):
    """Deterministic init matching the module: xavier_uniform weights,
    default torch.nn.Linear uniform biases."""
    E = emb_dim
    k1, k2, k3, k4 = jax.random.split(key, 4)
    bw1 = math.sqrt(6.0 / (2 * E + 2 * E))
    W1 = jax.random.uniform(k1, (2 * E, 2 * E), jnp.float32, -bw1, bw1)
    bw2 = math.sqrt(6.0 / (2 * E + E))
    W2 = jax.random.uniform(k2, (E, 2 * E), jnp.float32, -bw2, bw2)
    bb = 1.0 / math.sqrt(2 * E)
    b1 = jax.random.uniform(k3, (2 * E,), jnp.float32, -bb, bb)
    b2 = jax.random.uniform(k4, (E,), jnp.float32, -bb, bb)
    return W1, b1, W2, b2


if __name__ == "__main__":
    E = 32    # emb_dim
    W = 8     # window size

    key = jax.random.PRNGKey(0)
    kp, ka, kb, km = jax.random.split(key, 4)
    params = init_params(kp, E)

    # Two batch shapes: tiny (single grid step) and one exercising grid > 1
    # with batch padding and the lane-group output packing.
    for lead in [(2, 3), (35,)]:
        alpha = jax.random.uniform(ka, (*lead, W, E), jnp.float32, 0.1, 2.0)
        beta = jax.random.uniform(kb, (*lead, W, E), jnp.float32, 0.1, 2.0)
        mask = jax.random.bernoulli(km, 0.7, (*lead, W))

        ref_a, ref_b = beta_intersection_ref(alpha, beta, mask, params)

        # 1) Exact f32 path: tight tolerance against the f32 reference.
        out_a32, out_b32 = beta_intersection(alpha, beta, mask, params,
                                             matmul_dtype=jnp.float32)
        jax.block_until_ready((out_a32, out_b32))
        assert out_a32.shape == (*lead, E) and out_b32.shape == (*lead, E)
        assert jnp.allclose(out_a32, ref_a, atol=1e-5, rtol=1e-5)
        assert jnp.allclose(out_b32, ref_b, atol=1e-5, rtol=1e-5)

        # 2) Default path: bf16 input stream + bf16 MXU operands, f32
        #    accumulation / softmax / reductions -> loosened tolerance.
        out_a, out_b = beta_intersection(alpha, beta, mask, params)
        jax.block_until_ready((out_a, out_b))
        assert jnp.allclose(out_a, ref_a, atol=5e-2, rtol=5e-2)
        assert jnp.allclose(out_b, ref_b, atol=5e-2, rtol=5e-2)

    print("KERNEL_OK")
</pallas_src>

<mosaic_0001>
module attributes {stable_mosaic.version = 11 : i64} {
  func.func @_beta_intersection_kernel(%arg0: i32, %arg1: memref<2x64x65xf32, #tpu.memory_space<vmem>>, %arg2: memref<64x64xf32, #tpu.memory_space<vmem>>, %arg3: memref<1x64xf32, #tpu.memory_space<vmem>>, %arg4: memref<64x32xf32, #tpu.memory_space<vmem>>, %arg5: memref<1x32xf32, #tpu.memory_space<vmem>>, %arg6: memref<8x128xf32, #tpu.memory_space<vmem>>) attributes {dimension_semantics = [#tpu.dimension_semantics<parallel>], iteration_bounds = array<i64: 1>, scalar_prefetch = 0 : i64, scratch_operands = 0 : i64, tpu.core_type = #tpu.core_type<tc>, window_params = [{transform_indices = @transform_0, window_bounds = array<i64: 2, 64, 65>}, {pipeline_mode = #tpu.pipeline_mode<synchronous>, transform_indices = @transform_1, window_bounds = array<i64: 64, 64>}, {pipeline_mode = #tpu.pipeline_mode<synchronous>, transform_indices = @transform_2, window_bounds = array<i64: 1, 64>}, {pipeline_mode = #tpu.pipeline_mode<synchronous>, transform_indices = @transform_3, window_bounds = array<i64: 64, 32>}, {pipeline_mode = #tpu.pipeline_mode<synchronous>, transform_indices = @transform_4, window_bounds = array<i64: 1, 32>}, {transform_indices = @transform_5, window_bounds = array<i64: 8, 128>}]} {
    %c0 = arith.constant 0 : index
    %c0_0 = arith.constant 0 : index
    %c0_1 = arith.constant 0 : index
    %0 = vector.load %arg1[%c0, %c0_0, %c0_1] : memref<2x64x65xf32, #tpu.memory_space<vmem>>, vector<2x64x65xf32>
    %1 = vector.shape_cast %0 : vector<2x64x65xf32> to vector<128x65xf32>
    %2 = vector.extract_strided_slice %1 {offsets = [0, 0], sizes = [128, 64], strides = [1, 1]} : vector<128x65xf32> to vector<128x64xf32>
    %3 = vector.extract_strided_slice %1 {offsets = [0, 64], sizes = [128, 1], strides = [1, 1]} : vector<128x65xf32> to vector<128x1xf32>
    %c0_2 = arith.constant 0 : index
    %c0_3 = arith.constant 0 : index
    %4 = vector.load %arg2[%c0_2, %c0_3] : memref<64x64xf32, #tpu.memory_space<vmem>>, vector<64x64xf32>
    %cst = arith.constant dense<0.000000e+00> : vector<128x64xf32>
    %5 = tpu.matmul %2, %4, %cst {dimension_numbers = #tpu.dot_dimension_numbers<[1], [0], [0], [1], [0, 0, 1, 1], [], []>} : vector<128x64xf32>, vector<64x64xf32>, vector<128x64xf32> -> vector<128x64xf32>
    %c0_4 = arith.constant 0 : index
    %c0_5 = arith.constant 0 : index
    %6 = vector.load %arg3[%c0_4, %c0_5] : memref<1x64xf32, #tpu.memory_space<vmem>>, vector<1x64xf32>
    %7 = vector.broadcast %6 : vector<1x64xf32> to vector<128x64xf32>
    %8 = arith.addf %5, %7 : vector<128x64xf32>
    %cst_6 = arith.constant 0.000000e+00 : f32
    %9 = vector.broadcast %cst_6 : f32 to vector<128x64xf32>
    %10 = arith.maximumf %8, %9 : vector<128x64xf32>
    %c0_7 = arith.constant 0 : index
    %c0_8 = arith.constant 0 : index
    %11 = vector.load %arg4[%c0_7, %c0_8] : memref<64x32xf32, #tpu.memory_space<vmem>>, vector<64x32xf32>
    %cst_9 = arith.constant dense<0.000000e+00> : vector<128x32xf32>
    %12 = tpu.matmul %10, %11, %cst_9 {dimension_numbers = #tpu.dot_dimension_numbers<[1], [0], [0], [1], [0, 0, 1, 1], [], []>} : vector<128x64xf32>, vector<64x32xf32>, vector<128x32xf32> -> vector<128x32xf32>
    %c0_10 = arith.constant 0 : index
    %c0_11 = arith.constant 0 : index
    %13 = vector.load %arg5[%c0_10, %c0_11] : memref<1x32xf32, #tpu.memory_space<vmem>>, vector<1x32xf32>
    %14 = vector.broadcast %13 : vector<1x32xf32> to vector<128x32xf32>
    %15 = arith.addf %12, %14 : vector<128x32xf32>
    %16 = vector.broadcast %3 : vector<128x1xf32> to vector<128x32xf32>
    %17 = arith.addf %15, %16 : vector<128x32xf32>
    %18 = vector.shape_cast %17 : vector<128x32xf32> to vector<16x8x32xf32>
    %cst_12 = arith.constant dense<0xFF800000> : vector<16x32xf32>
    %19 = vector.multi_reduction <maximumf>, %18, %cst_12 [1] : vector<16x8x32xf32> to vector<16x32xf32>
    %20 = vector.shape_cast %19 : vector<16x32xf32> to vector<16x1x32xf32>
    %21 = vector.broadcast %20 : vector<16x1x32xf32> to vector<16x8x32xf32>
    %22 = arith.subf %18, %21 : vector<16x8x32xf32>
    %23 = math.exp %22 : vector<16x8x32xf32>
    %cst_13 = arith.constant dense<0.000000e+00> : vector<16x32xf32>
    %24 = vector.multi_reduction <add>, %23, %cst_13 [1] : vector<16x8x32xf32> to vector<16x32xf32>
    %25 = vector.shape_cast %24 : vector<16x32xf32> to vector<16x1x32xf32>
    %26 = vector.broadcast %25 : vector<16x1x32xf32> to vector<16x8x32xf32>
    %27 = arith.divf %23, %26 : vector<16x8x32xf32>
    %28 = tpu.concatenate %27, %27 in 2 : vector<16x8x32xf32>, vector<16x8x32xf32> -> vector<16x8x64xf32>
    %29 = vector.extract_strided_slice %1 {offsets = [0, 0], sizes = [128, 64], strides = [1, 1]} : vector<128x65xf32> to vector<128x64xf32>
    %30 = vector.shape_cast %29 : vector<128x64xf32> to vector<16x8x64xf32>
    %31 = arith.mulf %30, %28 : vector<16x8x64xf32>
    %cst_14 = arith.constant dense<0.000000e+00> : vector<16x64xf32>
    %32 = vector.multi_reduction <add>, %31, %cst_14 [1] : vector<16x8x64xf32> to vector<16x64xf32>
    %33 = vector.extract_strided_slice %32 {offsets = [0, 0], sizes = [8, 64], strides = [1, 1]} : vector<16x64xf32> to vector<8x64xf32>
    %34 = vector.extract_strided_slice %32 {offsets = [8, 0], sizes = [8, 64], strides = [1, 1]} : vector<16x64xf32> to vector<8x64xf32>
    %35 = tpu.concatenate %33, %34 in 1 : vector<8x64xf32>, vector<8x64xf32> -> vector<8x128xf32>
    %c0_15 = arith.constant 0 : index
    %c0_16 = arith.constant 0 : index
    %36 = vector.load %arg6[%c0_15, %c0_16] : memref<8x128xf32, #tpu.memory_space<vmem>>, vector<8x128xf32>
    tpu.vector_store %arg6[%c0_15, %c0_16], %35 {strides = array<i32>} : memref<8x128xf32, #tpu.memory_space<vmem>>, vector<8x128xf32>,
    return
  }
  func.func @transform_0(%arg0: i32) -> (i32, i32, i32) {
    %c0_i32 = arith.constant 0 : i32
    %c0_i32_0 = arith.constant 0 : i32
    %c0_i32_1 = arith.constant 0 : i32
    return %c0_i32, %arg0, %c0_i32_0 : i32, i32, i32
  }
  func.func @transform_1(%arg0: i32) -> (i32, i32) {
    %c0_i32 = arith.constant 0 : i32
    %c0_i32_0 = arith.constant 0 : i32
    %c0_i32_1 = arith.constant 0 : i32
    return %c0_i32, %c0_i32_0 : i32, i32
  }
  func.func @transform_2(%arg0: i32) -> (i32, i32) {
    %c0_i32 = arith.constant 0 : i32
    %c0_i32_0 = arith.constant 0 : i32
    %c0_i32_1 = arith.constant 0 : i32
    return %c0_i32, %c0_i32_0 : i32, i32
  }
  func.func @transform_3(%arg0: i32) -> (i32, i32) {
    %c0_i32 = arith.constant 0 : i32
    %c0_i32_0 = arith.constant 0 : i32
    %c0_i32_1 = arith.constant 0 : i32
    return %c0_i32, %c0_i32_0 : i32, i32
  }
  func.func @transform_4(%arg0: i32) -> (i32, i32) {
    %c0_i32 = arith.constant 0 : i32
    %c0_i32_0 = arith.constant 0 : i32
    %c0_i32_1 = arith.constant 0 : i32
    return %c0_i32, %c0_i32_0 : i32, i32
  }
  func.func @transform_5(%arg0: i32) -> (i32, i32) {
    %c0_i32 = arith.constant 0 : i32
    %c0_i32_0 = arith.constant 0 : i32
    return %arg0, %c0_i32 : i32, i32
  }
}

</mosaic_0001>

<llo_original>
// kernel: tpu_custom_call.1
$region0: #{tpu_custom_call.1}
  #allocation0 [shape = 'u32[]', space=smem, size = 0x4, offset = 0x4, fixed_abs, tag = 'smem constant byte address 0x4 - core index']
  #allocation1 [shape = 'u32[144,128]{1,0:T(1,128)}', space=vmem, size = 0x12000, scoped, tag = 'internal scratch']
  %s0 = inlined_call_operand.hbm [shape: f32[2,64,65], index: 0, kind: input, shape index: {}]
  %s1 = inlined_call_operand.vmem [shape: f32[64,64], index: 1, kind: input, shape index: {}]
  %s2 = inlined_call_operand.vmem [shape: f32[1,64], index: 2, kind: input, shape index: {}]
  %s3 = inlined_call_operand.vmem [shape: f32[64,32], index: 3, kind: input, shape index: {}]
  %s4 = inlined_call_operand.vmem [shape: f32[1,32], index: 4, kind: input, shape index: {}]
  %s5 = inlined_call_operand.hbm [shape: f32[8,128], index: 5, kind: output, shape index: {}]
  %s6 = sld [smem:[#allocation0]]
  $region34: #{tpu_custom_call.1} parent=0
    _
  %s8 = ssub.s32 1, %s6
  %s9 = scalar_select 0, %s8, %s6
  $region1: #{tpu_custom_call.1} parent=0
    #allocation2 [shape = 'u8[65536]{0}', space=vmem, size = 0x10000, scoped, tag = 'input window, operand 0, single buffered']
    #allocation3 [shape = 's32[1]{0}', space=sflag, size = 0x4, scoped, tag = 'scoped memory for tpu_custom_call.1']
    #allocation4 [shape = 's32[1]{0}', space=sflag, size = 0x4, scoped, tag = 'scoped memory for tpu_custom_call.1']
    #allocation5 [shape = 'u8[4096]{0}', space=vmem, size = 0x1000, scoped, tag = 'output window, operand 0, single buffered']
    %10 = vsyncpa [#allocation3], 0
    %11 = vsyncpa [#allocation4], 0
    // Predicated region
    $region2: #{tpu_custom_call.1} parent=1 // pred_check
      _
    $region3: #{tpu_custom_call.1} parent=1 // pred_check_branch
      %13 = sbr.rel (0) target = $region5
    $region4: #{tpu_custom_call.1} parent=1 // pred_region
      %s15 = ssub.s32 2048, 2048
      %16 = vsyncadd [#allocation3], %s15
      %s17 = sshll.u32 [#allocation2], 4
      %s18 = int_to_ptr.vmem [resolvable:$true] %s17
      %23 = dma.hbm_to_vmem [thread:$0]  %s0, 2048, %s18, [#allocation3], 128, 128, 8
    $region5: #{tpu_custom_call.1} parent=1 // pred_fallthru
      _
    // Predicated region
    $region6: #{tpu_custom_call.1} parent=1 // pred_check
      _
    $region7: #{tpu_custom_call.1} parent=1 // pred_check_branch
      %25 = sbr.rel (0) target = $region9
    $region8: #{tpu_custom_call.1} parent=1 // pred_region
      _
    $region9: #{tpu_custom_call.1} parent=1 // pred_fallthru
      _
    // Predicated region
    $region10: #{tpu_custom_call.1} parent=1 // pred_check
      _
    $region11: #{tpu_custom_call.1} parent=1 // pred_check_branch
      %27 = sbr.rel (0) target = $region13
    $region12: #{tpu_custom_call.1} parent=1 // pred_region
      _
    $region13: #{tpu_custom_call.1} parent=1 // pred_fallthru
      _
    // Predicated region
    $region14: #{tpu_custom_call.1} parent=1 // pred_check
      _
    $region15: #{tpu_custom_call.1} parent=1 // pred_check_branch
      %29 = sbr.rel (0) target = $region17
    $region16: #{tpu_custom_call.1} parent=1 // pred_region
      _
    $region17: #{tpu_custom_call.1} parent=1 // pred_fallthru
      _
    // Predicated region
    $region18: #{tpu_custom_call.1} parent=1 // pred_check
      _
    $region19: #{tpu_custom_call.1} parent=1 // pred_check_branch
      %31 = sbr.rel (0) target = $region21
    $region20: #{tpu_custom_call.1} parent=1 // pred_region
      _
    $region21: #{tpu_custom_call.1} parent=1 // pred_fallthru
      _
    // Predicated region
    $region22: #{tpu_custom_call.1} parent=1 // pred_check
      _
    $region23: #{tpu_custom_call.1} parent=1 // pred_check_branch
      %33 = sbr.rel (0) target = $region25
    $region24: #{tpu_custom_call.1} parent=1 // pred_region
      %34 = dma.done [#allocation3], 2048
    $region25: #{tpu_custom_call.1} parent=1 // pred_fallthru
      _
    %v35 = vld [vmem:[#allocation2] sm:$0xff]
    %v36 = vld [vmem:[#allocation2 + $0x8] sm:$0xff]
    %v37 = vld [vmem:[#allocation2 + $0x10] sm:$0xff]
    %v38 = vld [vmem:[#allocation2 + $0x18] sm:$0xff]
    %v39 = vld [vmem:[#allocation2 + $0x20] sm:$0xff]
    %v40 = vld [vmem:[#allocation2 + $0x28] sm:$0xff]
    %v41 = vld [vmem:[#allocation2 + $0x30] sm:$0xff]
    %v42 = vld [vmem:[#allocation2 + $0x38] sm:$0xff]
    %v43 = vld [vmem:[#allocation2 + $0x40] sm:$0xff]
    %v44 = vld [vmem:[#allocation2 + $0x48] sm:$0xff]
    %v45 = vld [vmem:[#allocation2 + $0x50] sm:$0xff]
    %v46 = vld [vmem:[#allocation2 + $0x58] sm:$0xff]
    %v47 = vld [vmem:[#allocation2 + $0x60] sm:$0xff]
    %v48 = vld [vmem:[#allocation2 + $0x68] sm:$0xff]
    %v49 = vld [vmem:[#allocation2 + $0x70] sm:$0xff]
    %v50 = vld [vmem:[#allocation2 + $0x78] sm:$0xff]
    %v51 = vld [vmem:[%s1] sm:$0xff]
    %v52 = vld [vmem:[%s1 + $0x8] sm:$0xff]
    %v53 = vld [vmem:[%s1 + $0x10] sm:$0xff]
    %v54 = vld [vmem:[%s1 + $0x18] sm:$0xff]
    %v55 = vld [vmem:[%s1 + $0x20] sm:$0xff]
    %v56 = vld [vmem:[%s1 + $0x28] sm:$0xff]
    %v57 = vld [vmem:[%s1 + $0x30] sm:$0xff]
    %v58 = vld [vmem:[%s1 + $0x38] sm:$0xff]
    %v59 = vld [vmem:[%s2] sm:$0x1]
    %v61 = vlaneseq
    %v62 = vshrl.u32 %v61, 7
    %v63 = vsub.s32 0, %v62
    %v64 = vrot.slane %v59, %v63
    %vm66 = vcmask 523264
    %v68 = vsel %vm66, %v35, 0
    %v71 = vsel %vm66, %v36, 0
    %v74 = vsel %vm66, %v37, 0
    %v77 = vsel %vm66, %v38, 0
    %v80 = vsel %vm66, %v39, 0
    %v83 = vsel %vm66, %v40, 0
    %v86 = vsel %vm66, %v41, 0
    %v89 = vsel %vm66, %v42, 0
    %v92 = vsel %vm66, %v43, 0
    %v95 = vsel %vm66, %v44, 0
    %v98 = vsel %vm66, %v45, 0
    %v101 = vsel %vm66, %v46, 0
    %v104 = vsel %vm66, %v47, 0
    %v107 = vsel %vm66, %v48, 0
    %v110 = vsel %vm66, %v49, 0
    %v113 = vsel %vm66, %v50, 0
    %115 = vmatprep.subr.mxu0 0.0
    %116 = vmatpush1.msra.mxu0 %v51
    %117 = vmatprep.subr.mxu0 0.0
    %118 = vmatpush1.msra.mxu0 %v52
    %119 = vmatprep.subr.mxu0 0.0
    %120 = vmatpush1.msra.mxu0 %v53
    %121 = vmatprep.subr.mxu0 0.0
    %122 = vmatpush1.msra.mxu0 %v54
    %123 = vmatprep.subr.mxu0 0.0
    %124 = vmatpush1.msra.mxu0 %v55
    %125 = vmatprep.subr.mxu0 0.0
    %126 = vmatpush1.msra.mxu0 %v56
    %127 = vmatprep.subr.mxu0 0.0
    %128 = vmatpush1.msra.mxu0 %v57
    %129 = vmatprep.subr.mxu0 0.0
    %130 = vmatpush1.msra.mxu0 %v58
    %131 = vmatprep.subr.mxu0 0.0
    %132 = vmatpush1.msra.mxu0 0.0
    %133 = vmatprep.subr.mxu0 0.0
    %134 = vmatpush1.msra.mxu0 0.0
    %135 = vmatprep.subr.mxu0 0.0
    %136 = vmatpush1.msra.mxu0 0.0
    %137 = vmatprep.subr.mxu0 0.0
    %138 = vmatpush1.msra.mxu0 0.0
    %139 = vmatprep.subr.mxu0 0.0
    %140 = vmatpush1.msra.mxu0 0.0
    %141 = vmatprep.subr.mxu0 0.0
    %142 = vmatpush1.msra.mxu0 0.0
    %143 = vmatprep.subr.mxu0 0.0
    %144 = vmatpush1.msra.mxu0 0.0
    %145 = vmatprep.subr.mxu0 0.0
    %146 = vmatpush1.msra.mxu0 0.0
    %147 = vmatprep.subr.mxu0 0.0
    %148 = vmatpush1.msra.mxu0 0.0
    %149 = vmatprep.subr.mxu0 0.0
    %150 = vmatpush1.msra.mxu0 0.0
    %151 = vmatprep.subr.mxu0 0.0
    %152 = vmatpush1.msra.mxu0 0.0
    %153 = vmatprep.subr.mxu0 0.0
    %154 = vmatpush1.msra.mxu0 0.0
    %155 = vmatprep.subr.mxu0 0.0
    %156 = vmatpush1.msra.mxu0 0.0
    %157 = vmatprep.subr.mxu0 0.0
    %158 = vmatpush1.msra.mxu0 0.0
    %159 = vmatprep.subr.mxu0 0.0
    %160 = vmatpush1.msra.mxu0 0.0
    %161 = vmatprep.subr.mxu0 0.0
    %162 = vmatpush1.msra.mxu0 0.0
    %163 = vmatprep.subr.mxu0 0.0
    %164 = vmatpush1.msra.mxu0 0.0
    %165 = vmatprep.subr.mxu0 0.0
    %166 = vmatpush1.msra.mxu0 0.0
    %167 = vmatprep.subr.mxu0 0.0
    %168 = vmatpush1.msra.mxu0 0.0
    %169 = vmatprep.subr.mxu0 0.0
    %170 = vmatpush1.msra.mxu0 0.0
    %171 = vmatprep.subr.mxu0 0.0
    %172 = vmatpush1.msra.mxu0 0.0
    %173 = vmatprep.subr.mxu0 0.0
    %174 = vmatpush1.msra.mxu0 0.0
    %175 = vmatprep.subr.mxu0 0.0
    %176 = vmatpush1.msra.mxu0 0.0
    %177 = vmatprep.subr.mxu0 0.0
    %178 = vmatpush1.msra.mxu0 0.0
    %179 = vmatprep.mubr.f32.mxu0 0.0
    %180 = vmatmul.mubr.f32.gmra.mrb[0].mxu0 %v68
    %v181 = vpop.f32.mrb[0].mxu0
    %v182 = vadd.f32 %v64, %v181
    %v183 = vpop.f32.mrb[0].mxu0
    %184 = vmatprep.mubr.f32.mxu0 0.0
    %185 = vmatmul.mubr.f32.gmra.mrb[0].mxu0 %v71
    %v186 = vpop.f32.mrb[0].mxu0
    %v187 = vadd.f32 %v64, %v186
    %v188 = vpop.f32.mrb[0].mxu0
    %189 = vmatprep.mubr.f32.mxu0 0.0
    %190 = vmatmul.mubr.f32.gmra.mrb[0].mxu0 %v74
    %v191 = vpop.f32.mrb[0].mxu0
    %v192 = vadd.f32 %v64, %v191
    %v193 = vpop.f32.mrb[0].mxu0
    %194 = vmatprep.mubr.f32.mxu0 0.0
    %195 = vmatmul.mubr.f32.gmra.mrb[0].mxu0 %v77
    %v196 = vpop.f32.mrb[0].mxu0
    %v197 = vadd.f32 %v64, %v196
    %v198 = vpop.f32.mrb[0].mxu0
    %199 = vmatprep.mubr.f32.mxu0 0.0
    %200 = vmatmul.mubr.f32.gmra.mrb[0].mxu0 %v80
    %v201 = vpop.f32.mrb[0].mxu0
    %v202 = vadd.f32 %v64, %v201
    %v203 = vpop.f32.mrb[0].mxu0
    %204 = vmatprep.mubr.f32.mxu0 0.0
    %205 = vmatmul.mubr.f32.gmra.mrb[0].mxu0 %v83
    %v206 = vpop.f32.mrb[0].mxu0
    %v207 = vadd.f32 %v64, %v206
    %v208 = vpop.f32.mrb[0].mxu0
    %209 = vmatprep.mubr.f32.mxu0 0.0
    %210 = vmatmul.mubr.f32.gmra.mrb[0].mxu0 %v86
    %v211 = vpop.f32.mrb[0].mxu0
    %v212 = vadd.f32 %v64, %v211
    %v213 = vpop.f32.mrb[0].mxu0
    %214 = vmatprep.mubr.f32.mxu0 0.0
    %215 = vmatmul.mubr.f32.gmra.mrb[0].mxu0 %v89
    %v216 = vpop.f32.mrb[0].mxu0
    %v217 = vadd.f32 %v64, %v216
    %v218 = vpop.f32.mrb[0].mxu0
    %219 = vmatprep.mubr.f32.mxu0 0.0
    %220 = vmatmul.mubr.f32.gmra.mrb[0].mxu0 %v92
    %v221 = vpop.f32.mrb[0].mxu0
    %v222 = vadd.f32 %v64, %v221
    %v223 = vpop.f32.mrb[0].mxu0
    %224 = vmatprep.mubr.f32.mxu0 0.0
    %225 = vmatmul.mubr.f32.gmra.mrb[0].mxu0 %v95
    %v226 = vpop.f32.mrb[0].mxu0
    %v227 = vadd.f32 %v64, %v226
    %v228 = vpop.f32.mrb[0].mxu0
    %229 = vmatprep.mubr.f32.mxu0 0.0
    %230 = vmatmul.mubr.f32.gmra.mrb[0].mxu0 %v98
    %v231 = vpop.f32.mrb[0].mxu0
    %v232 = vadd.f32 %v64, %v231
    %v233 = vpop.f32.mrb[0].mxu0
    %234 = vmatprep.mubr.f32.mxu0 0.0
    %235 = vmatmul.mubr.f32.gmra.mrb[0].mxu0 %v101
    %v236 = vpop.f32.mrb[0].mxu0
    %v237 = vadd.f32 %v64, %v236
    %v238 = vpop.f32.mrb[0].mxu0
    %239 = vmatprep.mubr.f32.mxu0 0.0
    %240 = vmatmul.mubr.f32.gmra.mrb[0].mxu0 %v104
    %v241 = vpop.f32.mrb[0].mxu0
    %v242 = vadd.f32 %v64, %v241
    %v243 = vpop.f32.mrb[0].mxu0
    %244 = vmatprep.mubr.f32.mxu0 0.0
    %245 = vmatmul.mubr.f32.gmra.mrb[0].mxu0 %v107
    %v246 = vpop.f32.mrb[0].mxu0
    %v247 = vadd.f32 %v64, %v246
    %v248 = vpop.f32.mrb[0].mxu0
    %249 = vmatprep.mubr.f32.mxu0 0.0
    %250 = vmatmul.mubr.f32.gmra.mrb[0].mxu0 %v110
    %v251 = vpop.f32.mrb[0].mxu0
    %v252 = vadd.f32 %v64, %v251
    %v253 = vpop.f32.mrb[0].mxu0
    %254 = vmatprep.mubr.f32.mxu0 0.0
    %255 = vmatmul.mubr.f32.gmra.mrb[0].mxu0 %v113
    %v256 = vpop.f32.mrb[0].mxu0
    %v257 = vadd.f32 %v64, %v256
    %v258 = vpop.f32.mrb[0].mxu0
    %259 = vdwg.mxu0
    %v260 = vmax.f32 %v182, 0.0
    %v261 = vmax.f32 %v187, 0.0
    %v262 = vmax.f32 %v192, 0.0
    %v263 = vmax.f32 %v197, 0.0
    %v264 = vmax.f32 %v202, 0.0
    %v265 = vmax.f32 %v207, 0.0
    %v266 = vmax.f32 %v212, 0.0
    %v267 = vmax.f32 %v217, 0.0
    %v268 = vmax.f32 %v222, 0.0
    %v269 = vmax.f32 %v227, 0.0
    %v270 = vmax.f32 %v232, 0.0
    %v271 = vmax.f32 %v237, 0.0
    %v272 = vmax.f32 %v242, 0.0
    %v273 = vmax.f32 %v247, 0.0
    %v274 = vmax.f32 %v252, 0.0
    %v275 = vmax.f32 %v257, 0.0
    %v276 = vld [vmem:[%s3] sm:$0xff]
    %v277 = vld [vmem:[%s3 + $0x8] sm:$0xff]
    %v278 = vld [vmem:[%s3 + $0x10] sm:$0xff]
    %v279 = vld [vmem:[%s3 + $0x18] sm:$0xff]
    %v280 = vld [vmem:[%s3 + $0x20] sm:$0xff]
    %v281 = vld [vmem:[%s3 + $0x28] sm:$0xff]
    %v282 = vld [vmem:[%s3 + $0x30] sm:$0xff]
    %v283 = vld [vmem:[%s3 + $0x38] sm:$0xff]
    %v284 = vld [vmem:[%s4] sm:$0x1]
    %v286 = vlaneseq
    %v287 = vshrl.u32 %v286, 7
    %v288 = vsub.s32 0, %v287
    %v289 = vrot.slane %v284, %v288
    %v292 = vsel %vm66, %v260, 0
    %v295 = vsel %vm66, %v261, 0
    %v298 = vsel %vm66, %v262, 0
    %v301 = vsel %vm66, %v263, 0
    %v304 = vsel %vm66, %v264, 0
    %v307 = vsel %vm66, %v265, 0
    %v310 = vsel %vm66, %v266, 0
    %v313 = vsel %vm66, %v267, 0
    %v316 = vsel %vm66, %v268, 0
    %v319 = vsel %vm66, %v269, 0
    %v322 = vsel %vm66, %v270, 0
    %v325 = vsel %vm66, %v271, 0
    %v328 = vsel %vm66, %v272, 0
    %v331 = vsel %vm66, %v273, 0
    %v334 = vsel %vm66, %v274, 0
    %v337 = vsel %vm66, %v275, 0
    %339 = vmatprep.subr.mxu0 0.0
    %340 = vmatpush1.msra.mxu0 %v276
    %341 = vmatprep.subr.mxu0 0.0
    %342 = vmatpush1.msra.mxu0 %v277
    %343 = vmatprep.subr.mxu0 0.0
    %344 = vmatpush1.msra.mxu0 %v278
    %345 = vmatprep.subr.mxu0 0.0
    %346 = vmatpush1.msra.mxu0 %v279
    %347 = vmatprep.subr.mxu0 0.0
    %348 = vmatpush1.msra.mxu0 %v280
    %349 = vmatprep.subr.mxu0 0.0
    %350 = vmatpush1.msra.mxu0 %v281
    %351 = vmatprep.subr.mxu0 0.0
    %352 = vmatpush1.msra.mxu0 %v282
    %353 = vmatprep.subr.mxu0 0.0
    %354 = vmatpush1.msra.mxu0 %v283
    %355 = vmatprep.subr.mxu0 0.0
    %356 = vmatpush1.msra.mxu0 0.0
    %357 = vmatprep.subr.mxu0 0.0
    %358 = vmatpush1.msra.mxu0 0.0
    %359 = vmatprep.subr.mxu0 0.0
    %360 = vmatpush1.msra.mxu0 0.0
    %361 = vmatprep.subr.mxu0 0.0
    %362 = vmatpush1.msra.mxu0 0.0
    %363 = vmatprep.subr.mxu0 0.0
    %364 = vmatpush1.msra.mxu0 0.0
    %365 = vmatprep.subr.mxu0 0.0
    %366 = vmatpush1.msra.mxu0 0.0
    %367 = vmatprep.subr.mxu0 0.0
    %368 = vmatpush1.msra.mxu0 0.0
    %369 = vmatprep.subr.mxu0 0.0
    %370 = vmatpush1.msra.mxu0 0.0
    %371 = vmatprep.subr.mxu0 0.0
    %372 = vmatpush1.msra.mxu0 0.0
    %373 = vmatprep.subr.mxu0 0.0
    %374 = vmatpush1.msra.mxu0 0.0
    %375 = vmatprep.subr.mxu0 0.0
    %376 = vmatpush1.msra.mxu0 0.0
    %377 = vmatprep.subr.mxu0 0.0
    %378 = vmatpush1.msra.mxu0 0.0
    %379 = vmatprep.subr.mxu0 0.0
    %380 = vmatpush1.msra.mxu0 0.0
    %381 = vmatprep.subr.mxu0 0.0
    %382 = vmatpush1.msra.mxu0 0.0
    %383 = vmatprep.subr.mxu0 0.0
    %384 = vmatpush1.msra.mxu0 0.0
    %385 = vmatprep.subr.mxu0 0.0
    %386 = vmatpush1.msra.mxu0 0.0
    %387 = vmatprep.subr.mxu0 0.0
    %388 = vmatpush1.msra.mxu0 0.0
    %389 = vmatprep.subr.mxu0 0.0
    %390 = vmatpush1.msra.mxu0 0.0
    %391 = vmatprep.subr.mxu0 0.0
    %392 = vmatpush1.msra.mxu0 0.0
    %393 = vmatprep.subr.mxu0 0.0
    %394 = vmatpush1.msra.mxu0 0.0
    %395 = vmatprep.subr.mxu0 0.0
    %396 = vmatpush1.msra.mxu0 0.0
    %397 = vmatprep.subr.mxu0 0.0
    %398 = vmatpush1.msra.mxu0 0.0
    %399 = vmatprep.subr.mxu0 0.0
    %400 = vmatpush1.msra.mxu0 0.0
    %401 = vmatprep.subr.mxu0 0.0
    %402 = vmatpush1.msra.mxu0 0.0
    %403 = vmatprep.mubr.f32.mxu0 0.0
    %404 = vmatmul.mubr.f32.gmra.mrb[0].mxu0 %v292
    %v405 = vpop.f32.mrb[0].mxu0
    %v406 = vadd.f32 %v289, %v405
    %v407 = vpop.f32.mrb[0].mxu0
    %408 = vmatprep.mubr.f32.mxu0 0.0
    %409 = vmatmul.mubr.f32.gmra.mrb[0].mxu0 %v295
    %v410 = vpop.f32.mrb[0].mxu0
    %v411 = vadd.f32 %v289, %v410
    %v412 = vpop.f32.mrb[0].mxu0
    %413 = vmatprep.mubr.f32.mxu0 0.0
    %414 = vmatmul.mubr.f32.gmra.mrb[0].mxu0 %v298
    %v415 = vpop.f32.mrb[0].mxu0
    %v416 = vadd.f32 %v289, %v415
    %v417 = vpop.f32.mrb[0].mxu0
    %418 = vmatprep.mubr.f32.mxu0 0.0
    %419 = vmatmul.mubr.f32.gmra.mrb[0].mxu0 %v301
    %v420 = vpop.f32.mrb[0].mxu0
    %v421 = vadd.f32 %v289, %v420
    %v422 = vpop.f32.mrb[0].mxu0
    %423 = vmatprep.mubr.f32.mxu0 0.0
    %424 = vmatmul.mubr.f32.gmra.mrb[0].mxu0 %v304
    %v425 = vpop.f32.mrb[0].mxu0
    %v426 = vadd.f32 %v289, %v425
    %v427 = vpop.f32.mrb[0].mxu0
    %428 = vmatprep.mubr.f32.mxu0 0.0
    %429 = vmatmul.mubr.f32.gmra.mrb[0].mxu0 %v307
    %v430 = vpop.f32.mrb[0].mxu0
    %v431 = vadd.f32 %v289, %v430
    %v432 = vpop.f32.mrb[0].mxu0
    %433 = vmatprep.mubr.f32.mxu0 0.0
    %434 = vmatmul.mubr.f32.gmra.mrb[0].mxu0 %v310
    %v435 = vpop.f32.mrb[0].mxu0
    %v436 = vadd.f32 %v289, %v435
    %v437 = vpop.f32.mrb[0].mxu0
    %438 = vmatprep.mubr.f32.mxu0 0.0
    %439 = vmatmul.mubr.f32.gmra.mrb[0].mxu0 %v313
    %v440 = vpop.f32.mrb[0].mxu0
    %v441 = vadd.f32 %v289, %v440
    %v442 = vpop.f32.mrb[0].mxu0
    %443 = vmatprep.mubr.f32.mxu0 0.0
    %444 = vmatmul.mubr.f32.gmra.mrb[0].mxu0 %v316
    %v445 = vpop.f32.mrb[0].mxu0
    %v446 = vadd.f32 %v289, %v445
    %v447 = vpop.f32.mrb[0].mxu0
    %448 = vmatprep.mubr.f32.mxu0 0.0
    %449 = vmatmul.mubr.f32.gmra.mrb[0].mxu0 %v319
    %v450 = vpop.f32.mrb[0].mxu0
    %v451 = vadd.f32 %v289, %v450
    %v452 = vpop.f32.mrb[0].mxu0
    %453 = vmatprep.mubr.f32.mxu0 0.0
    %454 = vmatmul.mubr.f32.gmra.mrb[0].mxu0 %v322
    %v455 = vpop.f32.mrb[0].mxu0
    %v456 = vadd.f32 %v289, %v455
    %v457 = vpop.f32.mrb[0].mxu0
    %458 = vmatprep.mubr.f32.mxu0 0.0
    %459 = vmatmul.mubr.f32.gmra.mrb[0].mxu0 %v325
    %v460 = vpop.f32.mrb[0].mxu0
    %v461 = vadd.f32 %v289, %v460
    %v462 = vpop.f32.mrb[0].mxu0
    %463 = vmatprep.mubr.f32.mxu0 0.0
    %464 = vmatmul.mubr.f32.gmra.mrb[0].mxu0 %v328
    %v465 = vpop.f32.mrb[0].mxu0
    %v466 = vadd.f32 %v289, %v465
    %v467 = vpop.f32.mrb[0].mxu0
    %468 = vmatprep.mubr.f32.mxu0 0.0
    %469 = vmatmul.mubr.f32.gmra.mrb[0].mxu0 %v331
    %v470 = vpop.f32.mrb[0].mxu0
    %v471 = vadd.f32 %v289, %v470
    %v472 = vpop.f32.mrb[0].mxu0
    %473 = vmatprep.mubr.f32.mxu0 0.0
    %474 = vmatmul.mubr.f32.gmra.mrb[0].mxu0 %v334
    %v475 = vpop.f32.mrb[0].mxu0
    %v476 = vadd.f32 %v289, %v475
    %v477 = vpop.f32.mrb[0].mxu0
    %478 = vmatprep.mubr.f32.mxu0 0.0
    %479 = vmatmul.mubr.f32.gmra.mrb[0].mxu0 %v337
    %v480 = vpop.f32.mrb[0].mxu0
    %v481 = vadd.f32 %v289, %v480
    %v482 = vpop.f32.mrb[0].mxu0
    %483 = vdwg.mxu0
    %484 = vset.pattern.permute.xlu0 64
    %485 = vperm.xlu0 %484, %v35
    %v486 = vpop.permute.xlu0 %485
    %488 = vset.pattern.permute.xlu0 64
    %489 = vperm.xlu0 %488, %v36
    %v490 = vpop.permute.xlu0 %489
    %492 = vset.pattern.permute.xlu0 64
    %493 = vperm.xlu0 %492, %v37
    %v494 = vpop.permute.xlu0 %493
    %496 = vset.pattern.permute.xlu0 64
    %497 = vperm.xlu0 %496, %v38
    %v498 = vpop.permute.xlu0 %497
    %500 = vset.pattern.permute.xlu0 64
    %501 = vperm.xlu0 %500, %v39
    %v502 = vpop.permute.xlu0 %501
    %504 = vset.pattern.permute.xlu0 64
    %505 = vperm.xlu0 %504, %v40
    %v506 = vpop.permute.xlu0 %505
    %508 = vset.pattern.permute.xlu0 64
    %509 = vperm.xlu0 %508, %v41
    %v510 = vpop.permute.xlu0 %509
    %512 = vset.pattern.permute.xlu0 64
    %513 = vperm.xlu0 %512, %v42
    %v514 = vpop.permute.xlu0 %513
    %516 = vset.pattern.permute.xlu0 64
    %517 = vperm.xlu0 %516, %v43
    %v518 = vpop.permute.xlu0 %517
    %520 = vset.pattern.permute.xlu0 64
    %521 = vperm.xlu0 %520, %v44
    %v522 = vpop.permute.xlu0 %521
    %524 = vset.pattern.permute.xlu0 64
    %525 = vperm.xlu0 %524, %v45
    %v526 = vpop.permute.xlu0 %525
    %528 = vset.pattern.permute.xlu0 64
    %529 = vperm.xlu0 %528, %v46
    %v530 = vpop.permute.xlu0 %529
    %532 = vset.pattern.permute.xlu0 64
    %533 = vperm.xlu0 %532, %v47
    %v534 = vpop.permute.xlu0 %533
    %536 = vset.pattern.permute.xlu0 64
    %537 = vperm.xlu0 %536, %v48
    %v538 = vpop.permute.xlu0 %537
    %540 = vset.pattern.permute.xlu0 64
    %541 = vperm.xlu0 %540, %v49
    %v542 = vpop.permute.xlu0 %541
    %544 = vset.pattern.permute.xlu0 64
    %545 = vperm.xlu0 %544, %v50
    %v546 = vpop.permute.xlu0 %545
    %v548 = vadd.f32 %v406, %v486
    %v549 = vadd.f32 %v411, %v490
    %v550 = vadd.f32 %v416, %v494
    %v551 = vadd.f32 %v421, %v498
    %v552 = vadd.f32 %v426, %v502
    %v553 = vadd.f32 %v431, %v506
    %v554 = vadd.f32 %v436, %v510
    %v555 = vadd.f32 %v441, %v514
    %v556 = vadd.f32 %v446, %v518
    %v557 = vadd.f32 %v451, %v522
    %v558 = vadd.f32 %v456, %v526
    %v559 = vadd.f32 %v461, %v530
    %v560 = vadd.f32 %v466, %v534
    %v561 = vadd.f32 %v471, %v538
    %v562 = vadd.f32 %v476, %v542
    %v563 = vadd.f32 %v481, %v546
    %vm564 = vcmask 261120
    %v565 = vsel %vm564, %v548, -inf
    %v566 = vrot.slane %v565, 4
    %v567 = vmax.f32 %v565, %v566
    %v568 = vrot.slane %v567, 2
    %v569 = vmax.f32 %v567, %v568
    %v570 = vrot.slane %v569, 1
    %v571 = vmax.f32 %v569, %v570
    %v572 = vsel %vm564, %v549, -inf
    %v573 = vrot.slane %v572, 4
    %v574 = vmax.f32 %v572, %v573
    %v575 = vrot.slane %v574, 2
    %v576 = vmax.f32 %v574, %v575
    %v577 = vrot.slane %v576, 1
    %v578 = vmax.f32 %v576, %v577
    %v579 = vsel %vm564, %v550, -inf
    %v580 = vrot.slane %v579, 4
    %v581 = vmax.f32 %v579, %v580
    %v582 = vrot.slane %v581, 2
    %v583 = vmax.f32 %v581, %v582
    %v584 = vrot.slane %v583, 1
    %v585 = vmax.f32 %v583, %v584
    %v586 = vsel %vm564, %v551, -inf
    %v587 = vrot.slane %v586, 4
    %v588 = vmax.f32 %v586, %v587
    %v589 = vrot.slane %v588, 2
    %v590 = vmax.f32 %v588, %v589
    %v591 = vrot.slane %v590, 1
    %v592 = vmax.f32 %v590, %v591
    %v593 = vsel %vm564, %v552, -inf
    %v594 = vrot.slane %v593, 4
    %v595 = vmax.f32 %v593, %v594
    %v596 = vrot.slane %v595, 2
    %v597 = vmax.f32 %v595, %v596
    %v598 = vrot.slane %v597, 1
    %v599 = vmax.f32 %v597, %v598
    %v600 = vsel %vm564, %v553, -inf
    %v601 = vrot.slane %v600, 4
    %v602 = vmax.f32 %v600, %v601
    %v603 = vrot.slane %v602, 2
    %v604 = vmax.f32 %v602, %v603
    %v605 = vrot.slane %v604, 1
    %v606 = vmax.f32 %v604, %v605
    %v607 = vsel %vm564, %v554, -inf
    %v608 = vrot.slane %v607, 4
    %v609 = vmax.f32 %v607, %v608
    %v610 = vrot.slane %v609, 2
    %v611 = vmax.f32 %v609, %v610
    %v612 = vrot.slane %v611, 1
    %v613 = vmax.f32 %v611, %v612
    %v614 = vsel %vm564, %v555, -inf
    %v615 = vrot.slane %v614, 4
    %v616 = vmax.f32 %v614, %v615
    %v617 = vrot.slane %v616, 2
    %v618 = vmax.f32 %v616, %v617
    %v619 = vrot.slane %v618, 1
    %v620 = vmax.f32 %v618, %v619
    %v621 = vsel %vm564, %v556, -inf
    %v622 = vrot.slane %v621, 4
    %v623 = vmax.f32 %v621, %v622
    %v624 = vrot.slane %v623, 2
    %v625 = vmax.f32 %v623, %v624
    %v626 = vrot.slane %v625, 1
    %v627 = vmax.f32 %v625, %v626
    %v628 = vsel %vm564, %v557, -inf
    %v629 = vrot.slane %v628, 4
    %v630 = vmax.f32 %v628, %v629
    %v631 = vrot.slane %v630, 2
    %v632 = vmax.f32 %v630, %v631
    %v633 = vrot.slane %v632, 1
    %v634 = vmax.f32 %v632, %v633
    %v635 = vsel %vm564, %v558, -inf
    %v636 = vrot.slane %v635, 4
    %v637 = vmax.f32 %v635, %v636
    %v638 = vrot.slane %v637, 2
    %v639 = vmax.f32 %v637, %v638
    %v640 = vrot.slane %v639, 1
    %v641 = vmax.f32 %v639, %v640
    %v642 = vsel %vm564, %v559, -inf
    %v643 = vrot.slane %v642, 4
    %v644 = vmax.f32 %v642, %v643
    %v645 = vrot.slane %v644, 2
    %v646 = vmax.f32 %v644, %v645
    %v647 = vrot.slane %v646, 1
    %v648 = vmax.f32 %v646, %v647
    %v649 = vsel %vm564, %v560, -inf
    %v650 = vrot.slane %v649, 4
    %v651 = vmax.f32 %v649, %v650
    %v652 = vrot.slane %v651, 2
    %v653 = vmax.f32 %v651, %v652
    %v654 = vrot.slane %v653, 1
    %v655 = vmax.f32 %v653, %v654
    %v656 = vsel %vm564, %v561, -inf
    %v657 = vrot.slane %v656, 4
    %v658 = vmax.f32 %v656, %v657
    %v659 = vrot.slane %v658, 2
    %v660 = vmax.f32 %v658, %v659
    %v661 = vrot.slane %v660, 1
    %v662 = vmax.f32 %v660, %v661
    %v663 = vsel %vm564, %v562, -inf
    %v664 = vrot.slane %v663, 4
    %v665 = vmax.f32 %v663, %v664
    %v666 = vrot.slane %v665, 2
    %v667 = vmax.f32 %v665, %v666
    %v668 = vrot.slane %v667, 1
    %v669 = vmax.f32 %v667, %v668
    %v670 = vsel %vm564, %v563, -inf
    %v671 = vrot.slane %v670, 4
    %v672 = vmax.f32 %v670, %v671
    %v673 = vrot.slane %v672, 2
    %v674 = vmax.f32 %v672, %v673
    %v675 = vrot.slane %v674, 1
    %v676 = vmax.f32 %v674, %v675
    %v677 = vsub.f32 %v548, %v571
    %v678 = vsub.f32 %v549, %v578
    %v679 = vsub.f32 %v550, %v585
    %v680 = vsub.f32 %v551, %v592
    %v681 = vsub.f32 %v552, %v599
    %v682 = vsub.f32 %v553, %v606
    %v683 = vsub.f32 %v554, %v613
    %v684 = vsub.f32 %v555, %v620
    %v685 = vsub.f32 %v556, %v627
    %v686 = vsub.f32 %v557, %v634
    %v687 = vsub.f32 %v558, %v641
    %v688 = vsub.f32 %v559, %v648
    %v689 = vsub.f32 %v560, %v655
    %v690 = vsub.f32 %v561, %v662
    %v691 = vsub.f32 %v562, %v669
    %v692 = vsub.f32 %v563, %v676
    %v693 = vmul.f32 %v677, 1.442695
    %v694 = vpow.pop %v693
    %v695 = vmul.f32 %v678, 1.442695
    %v696 = vpow.pop %v695
    %v697 = vmul.f32 %v679, 1.442695
    %v698 = vpow.pop %v697
    %v699 = vmul.f32 %v680, 1.442695
    %v700 = vpow.pop %v699
    %v701 = vmul.f32 %v681, 1.442695
    %v702 = vpow.pop %v701
    %v703 = vmul.f32 %v682, 1.442695
    %v704 = vpow.pop %v703
    %v705 = vmul.f32 %v683, 1.442695
    %v706 = vpow.pop %v705
    %v707 = vmul.f32 %v684, 1.442695
    %v708 = vpow.pop %v707
    %v709 = vmul.f32 %v685, 1.442695
    %v710 = vpow.pop %v709
    %v711 = vmul.f32 %v686, 1.442695
    %v712 = vpow.pop %v711
    %v713 = vmul.f32 %v687, 1.442695
    %v714 = vpow.pop %v713
    %v715 = vmul.f32 %v688, 1.442695
    %v716 = vpow.pop %v715
    %v717 = vmul.f32 %v689, 1.442695
    %v718 = vpow.pop %v717
    %v719 = vmul.f32 %v690, 1.442695
    %v720 = vpow.pop %v719
    %v721 = vmul.f32 %v691, 1.442695
    %v722 = vpow.pop %v721
    %v723 = vmul.f32 %v692, 1.442695
    %v724 = vpow.pop %v723
    %v725 = vsel %vm564, %v694, 0.0
    %v726 = vrot.slane %v725, 4
    %v727 = vadd.f32 %v725, %v726
    %v728 = vrot.slane %v727, 2
    %v729 = vadd.f32 %v727, %v728
    %v730 = vrot.slane %v729, 1
    %v731 = vadd.f32 %v729, %v730
    %v732 = vsel %vm564, %v696, 0.0
    %v733 = vrot.slane %v732, 4
    %v734 = vadd.f32 %v732, %v733
    %v735 = vrot.slane %v734, 2
    %v736 = vadd.f32 %v734, %v735
    %v737 = vrot.slane %v736, 1
    %v738 = vadd.f32 %v736, %v737
    %v739 = vsel %vm564, %v698, 0.0
    %v740 = vrot.slane %v739, 4
    %v741 = vadd.f32 %v739, %v740
    %v742 = vrot.slane %v741, 2
    %v743 = vadd.f32 %v741, %v742
    %v744 = vrot.slane %v743, 1
    %v745 = vadd.f32 %v743, %v744
    %v746 = vsel %vm564, %v700, 0.0
    %v747 = vrot.slane %v746, 4
    %v748 = vadd.f32 %v746, %v747
    %v749 = vrot.slane %v748, 2
    %v750 = vadd.f32 %v748, %v749
    %v751 = vrot.slane %v750, 1
    %v752 = vadd.f32 %v750, %v751
    %v753 = vsel %vm564, %v702, 0.0
    %v754 = vrot.slane %v753, 4
    %v755 = vadd.f32 %v753, %v754
    %v756 = vrot.slane %v755, 2
    %v757 = vadd.f32 %v755, %v756
    %v758 = vrot.slane %v757, 1
    %v759 = vadd.f32 %v757, %v758
    %v760 = vsel %vm564, %v704, 0.0
    %v761 = vrot.slane %v760, 4
    %v762 = vadd.f32 %v760, %v761
    %v763 = vrot.slane %v762, 2
    %v764 = vadd.f32 %v762, %v763
    %v765 = vrot.slane %v764, 1
    %v766 = vadd.f32 %v764, %v765
    %v767 = vsel %vm564, %v706, 0.0
    %v768 = vrot.slane %v767, 4
    %v769 = vadd.f32 %v767, %v768
    %v770 = vrot.slane %v769, 2
    %v771 = vadd.f32 %v769, %v770
    %v772 = vrot.slane %v771, 1
    %v773 = vadd.f32 %v771, %v772
    %v774 = vsel %vm564, %v708, 0.0
    %v775 = vrot.slane %v774, 4
    %v776 = vadd.f32 %v774, %v775
    %v777 = vrot.slane %v776, 2
    %v778 = vadd.f32 %v776, %v777
    %v779 = vrot.slane %v778, 1
    %v780 = vadd.f32 %v778, %v779
    %v781 = vsel %vm564, %v710, 0.0
    %v782 = vrot.slane %v781, 4
    %v783 = vadd.f32 %v781, %v782
    %v784 = vrot.slane %v783, 2
    %v785 = vadd.f32 %v783, %v784
    %v786 = vrot.slane %v785, 1
    %v787 = vadd.f32 %v785, %v786
    %v788 = vsel %vm564, %v712, 0.0
    %v789 = vrot.slane %v788, 4
    %v790 = vadd.f32 %v788, %v789
    %v791 = vrot.slane %v790, 2
    %v792 = vadd.f32 %v790, %v791
    %v793 = vrot.slane %v792, 1
    %v794 = vadd.f32 %v792, %v793
    %v795 = vsel %vm564, %v714, 0.0
    %v796 = vrot.slane %v795, 4
    %v797 = vadd.f32 %v795, %v796
    %v798 = vrot.slane %v797, 2
    %v799 = vadd.f32 %v797, %v798
    %v800 = vrot.slane %v799, 1
    %v801 = vadd.f32 %v799, %v800
    %v802 = vsel %vm564, %v716, 0.0
    %v803 = vrot.slane %v802, 4
    %v804 = vadd.f32 %v802, %v803
    %v805 = vrot.slane %v804, 2
    %v806 = vadd.f32 %v804, %v805
    %v807 = vrot.slane %v806, 1
    %v808 = vadd.f32 %v806, %v807
    %v809 = vsel %vm564, %v718, 0.0
    %v810 = vrot.slane %v809, 4
    %v811 = vadd.f32 %v809, %v810
    %v812 = vrot.slane %v811, 2
    %v813 = vadd.f32 %v811, %v812
    %v814 = vrot.slane %v813, 1
    %v815 = vadd.f32 %v813, %v814
    %v816 = vsel %vm564, %v720, 0.0
    %v817 = vrot.slane %v816, 4
    %v818 = vadd.f32 %v816, %v817
    %v819 = vrot.slane %v818, 2
    %v820 = vadd.f32 %v818, %v819
    %v821 = vrot.slane %v820, 1
    %v822 = vadd.f32 %v820, %v821
    %v823 = vsel %vm564, %v722, 0.0
    %v824 = vrot.slane %v823, 4
    %v825 = vadd.f32 %v823, %v824
    %v826 = vrot.slane %v825, 2
    %v827 = vadd.f32 %v825, %v826
    %v828 = vrot.slane %v827, 1
    %v829 = vadd.f32 %v827, %v828
    %v830 = vsel %vm564, %v724, 0.0
    %v831 = vrot.slane %v830, 4
    %v832 = vadd.f32 %v830, %v831
    %v833 = vrot.slane %v832, 2
    %v834 = vadd.f32 %v832, %v833
    %v835 = vrot.slane %v834, 1
    %v836 = vadd.f32 %v834, %v835
    %v837 = vrcp.pop %v731
    %v838 = vmul.f32 %v694, %v837
    %v839 = vrcp.pop %v738
    %v840 = vmul.f32 %v696, %v839
    %v841 = vrcp.pop %v745
    %v842 = vmul.f32 %v698, %v841
    %v843 = vrcp.pop %v752
    %v844 = vmul.f32 %v700, %v843
    %v845 = vrcp.pop %v759
    %v846 = vmul.f32 %v702, %v845
    %v847 = vrcp.pop %v766
    %v848 = vmul.f32 %v704, %v847
    %v849 = vrcp.pop %v773
    %v850 = vmul.f32 %v706, %v849
    %v851 = vrcp.pop %v780
    %v852 = vmul.f32 %v708, %v851
    %v853 = vrcp.pop %v787
    %v854 = vmul.f32 %v710, %v853
    %v855 = vrcp.pop %v794
    %v856 = vmul.f32 %v712, %v855
    %v857 = vrcp.pop %v801
    %v858 = vmul.f32 %v714, %v857
    %v859 = vrcp.pop %v808
    %v860 = vmul.f32 %v716, %v859
    %v861 = vrcp.pop %v815
    %v862 = vmul.f32 %v718, %v861
    %v863 = vrcp.pop %v822
    %v864 = vmul.f32 %v720, %v863
    %v865 = vrcp.pop %v829
    %v866 = vmul.f32 %v722, %v865
    %v867 = vrcp.pop %v836
    %v868 = vmul.f32 %v724, %v867
    %885 = vrot.lane.b32.xlu0 %v838, 32
    %v886 = vpop.permute.xlu0 %885
    %887 = vrot.lane.b32.xlu0 %v840, 32
    %v888 = vpop.permute.xlu0 %887
    %889 = vrot.lane.b32.xlu0 %v842, 32
    %v890 = vpop.permute.xlu0 %889
    %891 = vrot.lane.b32.xlu0 %v844, 32
    %v892 = vpop.permute.xlu0 %891
    %893 = vrot.lane.b32.xlu0 %v846, 32
    %v894 = vpop.permute.xlu0 %893
    %895 = vrot.lane.b32.xlu0 %v848, 32
    %v896 = vpop.permute.xlu0 %895
    %897 = vrot.lane.b32.xlu0 %v850, 32
    %v898 = vpop.permute.xlu0 %897
    %899 = vrot.lane.b32.xlu0 %v852, 32
    %v900 = vpop.permute.xlu0 %899
    %901 = vrot.lane.b32.xlu0 %v854, 32
    %v902 = vpop.permute.xlu0 %901
    %903 = vrot.lane.b32.xlu0 %v856, 32
    %v904 = vpop.permute.xlu0 %903
    %905 = vrot.lane.b32.xlu0 %v858, 32
    %v906 = vpop.permute.xlu0 %905
    %907 = vrot.lane.b32.xlu0 %v860, 32
    %v908 = vpop.permute.xlu0 %907
    %909 = vrot.lane.b32.xlu0 %v862, 32
    %v910 = vpop.permute.xlu0 %909
    %911 = vrot.lane.b32.xlu0 %v864, 32
    %v912 = vpop.permute.xlu0 %911
    %913 = vrot.lane.b32.xlu0 %v866, 32
    %v914 = vpop.permute.xlu0 %913
    %915 = vrot.lane.b32.xlu0 %v868, 32
    %v916 = vpop.permute.xlu0 %915
    %v933 = vsel %vm564, %v838, %v886
    %v934 = vsel %vm564, %v840, %v888
    %v935 = vsel %vm564, %v842, %v890
    %v936 = vsel %vm564, %v844, %v892
    %v937 = vsel %vm564, %v846, %v894
    %v938 = vsel %vm564, %v848, %v896
    %v939 = vsel %vm564, %v850, %v898
    %v940 = vsel %vm564, %v852, %v900
    %v941 = vsel %vm564, %v854, %v902
    %v942 = vsel %vm564, %v856, %v904
    %v943 = vsel %vm564, %v858, %v906
    %v944 = vsel %vm564, %v860, %v908
    %v945 = vsel %vm564, %v862, %v910
    %v946 = vsel %vm564, %v864, %v912
    %v947 = vsel %vm564, %v866, %v914
    %v948 = vsel %vm564, %v868, %v916
    %v949 = vmul.f32 %v35, %v933
    %v950 = vmul.f32 %v36, %v934
    %v951 = vmul.f32 %v37, %v935
    %v952 = vmul.f32 %v38, %v936
    %v953 = vmul.f32 %v39, %v937
    %v954 = vmul.f32 %v40, %v938
    %v955 = vmul.f32 %v41, %v939
    %v956 = vmul.f32 %v42, %v940
    %v957 = vmul.f32 %v43, %v941
    %v958 = vmul.f32 %v44, %v942
    %v959 = vmul.f32 %v45, %v943
    %v960 = vmul.f32 %v46, %v944
    %v961 = vmul.f32 %v47, %v945
    %v962 = vmul.f32 %v48, %v946
    %v963 = vmul.f32 %v49, %v947
    %v964 = vmul.f32 %v50, %v948
    %v965 = vsel %vm66, %v949, 0.0
    %v966 = vrot.slane %v965, 4
    %v967 = vadd.f32 %v965, %v966
    %v968 = vrot.slane %v967, 2
    %v969 = vadd.f32 %v967, %v968
    %v970 = vrot.slane %v969, 1
    %v971 = vadd.f32 %v969, %v970
    %v972 = vsel %vm66, %v950, 0.0
    %v973 = vrot.slane %v972, 4
    %v974 = vadd.f32 %v972, %v973
    %v975 = vrot.slane %v974, 2
    %v976 = vadd.f32 %v974, %v975
    %v977 = vrot.slane %v976, 1
    %v978 = vadd.f32 %v976, %v977
    %v979 = vsel %vm66, %v951, 0.0
    %v980 = vrot.slane %v979, 4
    %v981 = vadd.f32 %v979, %v980
    %v982 = vrot.slane %v981, 2
    %v983 = vadd.f32 %v981, %v982
    %v984 = vrot.slane %v983, 1
    %v985 = vadd.f32 %v983, %v984
    %v986 = vsel %vm66, %v952, 0.0
    %v987 = vrot.slane %v986, 4
    %v988 = vadd.f32 %v986, %v987
    %v989 = vrot.slane %v988, 2
    %v990 = vadd.f32 %v988, %v989
    %v991 = vrot.slane %v990, 1
    %v992 = vadd.f32 %v990, %v991
    %v993 = vsel %vm66, %v953, 0.0
    %v994 = vrot.slane %v993, 4
    %v995 = vadd.f32 %v993, %v994
    %v996 = vrot.slane %v995, 2
    %v997 = vadd.f32 %v995, %v996
    %v998 = vrot.slane %v997, 1
    %v999 = vadd.f32 %v997, %v998
    %v1000 = vsel %vm66, %v954, 0.0
    %v1001 = vrot.slane %v1000, 4
    %v1002 = vadd.f32 %v1000, %v1001
    %v1003 = vrot.slane %v1002, 2
    %v1004 = vadd.f32 %v1002, %v1003
    %v1005 = vrot.slane %v1004, 1
    %v1006 = vadd.f32 %v1004, %v1005
    %v1007 = vsel %vm66, %v955, 0.0
    %v1008 = vrot.slane %v1007, 4
    %v1009 = vadd.f32 %v1007, %v1008
    %v1010 = vrot.slane %v1009, 2
    %v1011 = vadd.f32 %v1009, %v1010
    %v1012 = vrot.slane %v1011, 1
    %v1013 = vadd.f32 %v1011, %v1012
    %v1014 = vsel %vm66, %v956, 0.0
    %v1015 = vrot.slane %v1014, 4
    %v1016 = vadd.f32 %v1014, %v1015
    %v1017 = vrot.slane %v1016, 2
    %v1018 = vadd.f32 %v1016, %v1017
    %v1019 = vrot.slane %v1018, 1
    %v1020 = vadd.f32 %v1018, %v1019
    %v1021 = vsel %vm66, %v957, 0.0
    %v1022 = vrot.slane %v1021, 4
    %v1023 = vadd.f32 %v1021, %v1022
    %v1024 = vrot.slane %v1023, 2
    %v1025 = vadd.f32 %v1023, %v1024
    %v1026 = vrot.slane %v1025, 1
    %v1027 = vadd.f32 %v1025, %v1026
    %v1028 = vsel %vm66, %v958, 0.0
    %v1029 = vrot.slane %v1028, 4
    %v1030 = vadd.f32 %v1028, %v1029
    %v1031 = vrot.slane %v1030, 2
    %v1032 = vadd.f32 %v1030, %v1031
    %v1033 = vrot.slane %v1032, 1
    %v1034 = vadd.f32 %v1032, %v1033
    %v1035 = vsel %vm66, %v959, 0.0
    %v1036 = vrot.slane %v1035, 4
    %v1037 = vadd.f32 %v1035, %v1036
    %v1038 = vrot.slane %v1037, 2
    %v1039 = vadd.f32 %v1037, %v1038
    %v1040 = vrot.slane %v1039, 1
    %v1041 = vadd.f32 %v1039, %v1040
    %v1042 = vsel %vm66, %v960, 0.0
    %v1043 = vrot.slane %v1042, 4
    %v1044 = vadd.f32 %v1042, %v1043
    %v1045 = vrot.slane %v1044, 2
    %v1046 = vadd.f32 %v1044, %v1045
    %v1047 = vrot.slane %v1046, 1
    %v1048 = vadd.f32 %v1046, %v1047
    %v1049 = vsel %vm66, %v961, 0.0
    %v1050 = vrot.slane %v1049, 4
    %v1051 = vadd.f32 %v1049, %v1050
    %v1052 = vrot.slane %v1051, 2
    %v1053 = vadd.f32 %v1051, %v1052
    %v1054 = vrot.slane %v1053, 1
    %v1055 = vadd.f32 %v1053, %v1054
    %v1056 = vsel %vm66, %v962, 0.0
    %v1057 = vrot.slane %v1056, 4
    %v1058 = vadd.f32 %v1056, %v1057
    %v1059 = vrot.slane %v1058, 2
    %v1060 = vadd.f32 %v1058, %v1059
    %v1061 = vrot.slane %v1060, 1
    %v1062 = vadd.f32 %v1060, %v1061
    %v1063 = vsel %vm66, %v963, 0.0
    %v1064 = vrot.slane %v1063, 4
    %v1065 = vadd.f32 %v1063, %v1064
    %v1066 = vrot.slane %v1065, 2
    %v1067 = vadd.f32 %v1065, %v1066
    %v1068 = vrot.slane %v1067, 1
    %v1069 = vadd.f32 %v1067, %v1068
    %v1070 = vsel %vm66, %v964, 0.0
    %v1071 = vrot.slane %v1070, 4
    %v1072 = vadd.f32 %v1070, %v1071
    %v1073 = vrot.slane %v1072, 2
    %v1074 = vadd.f32 %v1072, %v1073
    %v1075 = vrot.slane %v1074, 1
    %v1076 = vadd.f32 %v1074, %v1075
    %vm1085 = vcmask 1041409
    %v1086 = vsel %vm1085, %v978, %v971
    %vm1087 = vcmask 1042434
    %v1088 = vsel %vm1087, %v985, %v1086
    %vm1089 = vcmask 1043459
    %v1090 = vsel %vm1089, %v992, %v1088
    %vm1091 = vcmask 1044484
    %v1092 = vsel %vm1091, %v999, %v1090
    %vm1093 = vcmask 1045509
    %v1094 = vsel %vm1093, %v1006, %v1092
    %vm1095 = vcmask 1046534
    %v1096 = vsel %vm1095, %v1013, %v1094
    %vm1097 = vcmask 1047559
    %v1098 = vsel %vm1097, %v1020, %v1096
    %v1108 = vsel %vm1085, %v1034, %v1027
    %v1109 = vsel %vm1087, %v1041, %v1108
    %v1110 = vsel %vm1089, %v1048, %v1109
    %v1111 = vsel %vm1091, %v1055, %v1110
    %v1112 = vsel %vm1093, %v1062, %v1111
    %v1113 = vsel %vm1095, %v1069, %v1112
    %v1114 = vsel %vm1097, %v1076, %v1113
    %1115 = vrot.lane.b32.xlu0 %v1114, 64
    %v1116 = vpop.permute.xlu0 %1115
    %v1118 = vsel %vm66, %v1098, %v1116
    %1119 = vst [vmem:[#allocation5] sm:$0xff] %v1118
    // Predicated region
    $region26: #{tpu_custom_call.1} parent=1 // pred_check
      _
    $region27: #{tpu_custom_call.1} parent=1 // pred_check_branch
      %1121 = sbr.rel (0) target = $region29
    $region28: #{tpu_custom_call.1} parent=1 // pred_region
      %s1123 = ssub.s32 128, 128
      %1124 = vsyncadd [#allocation4], %s1123
      %s1126 = sshll.u32 [#allocation5], 4
      %s1127 = int_to_ptr.vmem [resolvable:$true] %s1126
      %1129 = dma.vmem_to_hbm [thread:$0]  %s1127, 128, %s5, [#allocation4]
    $region29: #{tpu_custom_call.1} parent=1 // pred_fallthru
      _
    // Predicated region
    $region30: #{tpu_custom_call.1} parent=1 // pred_check
      _
    $region31: #{tpu_custom_call.1} parent=1 // pred_check_branch
      %1131 = sbr.rel (0) target = $region33
    $region32: #{tpu_custom_call.1} parent=1 // pred_region
      %1132 = dma.done [#allocation4], 128
    $region33: #{tpu_custom_call.1} parent=1 // pred_fallthru
      _
    %1133 = vsyncpa [#allocation3], 1
    %1134 = vsyncpa [#allocation4], 1

</llo_original>
